<compile_context>
chip_gen: v6e
topology: v6e:2x2x1
jax: 0.10.0
libtpu: 0.0.40
codegen_flags: <defaults>
</compile_context>

<pallas_src>
import jax
import jax.numpy as jnp
from jax.experimental import pallas as pl
from jax.experimental.pallas import tpu as pltpu


# ---- packed-weight row layout (bf16, 128 lanes wide) ------------------------
K_IN = 32          # flat 5x5 input, padded 25 -> 32
R_W1 = 0           # rows [  0,  32): conv1 weight, im2col folded       [32, 128]
R_W2 = 32          # rows [ 32, 160): conv2 weight, cols >=64 zero      [128, 128]
R_W3 = 160         # rows [160, 288): fc1 weight,  rows >=64 zero       [128, 128]
R_TAIL = 288       # rows [288, 304): tail tile (biases / fc2 row)      [16, 128]
#   tail row 0: conv1 bias tiled over the 4 output positions
#   tail row 1: conv2 bias (lanes >=64 zero)
#   tail row 2: fc1 bias
#   tail row 3: fc2 weight row
#   tail row 4: fc2 bias broadcast across lanes
N_ROWS = 304       # multiple of 16 (bf16 sublane tile)

TILE_M = 256       # batch rows per grid step (multiple of 256 for v6e/v7x MXU)


def net_kernel(p_ref, w_ref, o_ref):
    # One [16,128] load of the tail tile; slice biases / fc2 row in-register.
    tail = w_ref[R_TAIL:R_TAIL + 16, :].astype(jnp.float32)
    b1 = tail[0:1, :]
    b2 = tail[1:2, :]
    b3 = tail[2:3, :]
    w4 = tail[3:4, :]
    b4 = tail[4:5, 0:1]                                     # [1, 1]

    x = p_ref[...]                                          # [TILE_M, 32] bf16

    # conv1 (im2col folded into the weight): all 4 output positions x 32
    # channels land lane-dense in one [TILE_M, 128] activation.
    a1 = jnp.dot(x, w_ref[R_W1:R_W1 + K_IN, :],
                 preferred_element_type=jnp.float32)
    a1 = jnp.maximum(a1 + b1, 0.0)                          # [TILE_M, 128] f32

    # conv2: one [TILE_M,128] @ [128,128] matmul (cols >= 64 are zero padding).
    a2 = jnp.dot(a1.astype(jnp.bfloat16), w_ref[R_W2:R_W2 + 128, :],
                 preferred_element_type=jnp.float32)
    a2 = jnp.maximum(a2 + b2, 0.0)                          # [TILE_M, 128] f32

    # fc1: [TILE_M,128] @ [128,128] (rows >= 64 of the weight are zero padding).
    a3 = jnp.dot(a2.astype(jnp.bfloat16), w_ref[R_W3:R_W3 + 128, :],
                 preferred_element_type=jnp.float32)
    a3 = jnp.maximum(a3 + b3, 0.0)                          # [TILE_M, 128] f32

    # fc2 on VPU/XLU (no MXU push): lane-wise multiply, transpose on the idle
    # XLU, sublane reduce -> lane-dense [1, TILE_M] output (unmasked stores).
    prod_t = jnp.transpose(a3 * w4)                         # [128, TILE_M]
    logits = jnp.sum(prod_t, axis=0, keepdims=True)         # [1, TILE_M]
    o_ref[...] = jax.nn.sigmoid(logits + b4)


def prepare_params(params):
    """One-time parameter prep: pack all weights/biases into a single
    [N_ROWS, 128] bf16 array (built in f32, cast once)."""
    w1, b1, w2, b2, w3, b3, w4, b4 = params

    # conv1 weight with the im2col permutation folded in:
    #   row = flat 5x5 input index (padded 25->32), col = pos*32 + out_channel,
    #   pos = oh*2 + ow over the 2x2 conv1 output grid.
    w1_fold = jnp.zeros((K_IN, 128), jnp.float32)
    for oh in range(2):
        for ow in range(2):
            c0 = (oh * 2 + ow) * 32
            for kh in range(4):
                for kw in range(4):
                    flat = (oh + kh) * 5 + (ow + kw)
                    w1_fold = w1_fold.at[flat, c0:c0 + 32].set(w1[:, 0, kh, kw])
    b1_row = jnp.tile(b1, 4)                                  # [128]

    # conv2 weight [64,32,2,2] -> [p*32+c, oc] = [128, 64], zero-pad cols.
    w2_flat = jnp.transpose(w2.reshape(64, 32, 4), (2, 1, 0)).reshape(128, 64)
    w2_pad = jnp.zeros((128, 128), jnp.float32).at[:, :64].set(w2_flat)
    b2_row = jnp.zeros((128,), jnp.float32).at[:64].set(b2)

    # fc1 weight [128,64] -> [64,128], zero-pad rows to 128.
    w3_pad = jnp.zeros((128, 128), jnp.float32).at[:64, :].set(w3.T)

    packed = jnp.zeros((N_ROWS, 128), jnp.float32)
    packed = packed.at[R_W1:R_W1 + K_IN].set(w1_fold)
    packed = packed.at[R_W2:R_W2 + 128].set(w2_pad)
    packed = packed.at[R_W3:R_W3 + 128].set(w3_pad)
    packed = packed.at[R_TAIL + 0].set(b1_row)
    packed = packed.at[R_TAIL + 1].set(b2_row)
    packed = packed.at[R_TAIL + 2].set(b3)
    packed = packed.at[R_TAIL + 3].set(w4.reshape(128))
    packed = packed.at[R_TAIL + 4].set(jnp.full((128,), b4[0], jnp.float32))
    return packed.astype(jnp.bfloat16)


@jax.jit
def net_forward(x, packed):
    """x: [B, 1, 5, 5] f32 (B a multiple of TILE_M); returns sigmoid outputs (B,)."""
    B = x.shape[0]
    assert B % TILE_M == 0, "batch must be a multiple of TILE_M"
    # Per-call glue is just flatten + pad + cast (im2col lives in the weights).
    xp = jnp.pad(x.reshape(B, 25), ((0, 0), (0, K_IN - 25))).astype(jnp.bfloat16)

    out = pl.pallas_call(
        net_kernel,
        out_shape=jax.ShapeDtypeStruct((1, B), jnp.float32),
        grid=(B // TILE_M,),
        in_specs=[
            pl.BlockSpec((TILE_M, K_IN), lambda b: (b, 0)),   # batch tile
            pl.BlockSpec((N_ROWS, 128), lambda b: (0, 0)),    # resident weights
        ],
        out_specs=pl.BlockSpec((1, TILE_M), lambda b: (0, b)),  # lane-dense
        compiler_params=pltpu.CompilerParams(
            dimension_semantics=("parallel",)),
    )(xp, packed)
    return out.reshape(B)


def init_params(key):
    ks = jax.random.split(key, 8)
    scale = 0.1
    w1 = scale * jax.random.normal(ks[0], (32, 1, 4, 4), jnp.float32)
    b1 = scale * jax.random.normal(ks[1], (32,), jnp.float32)
    w2 = scale * jax.random.normal(ks[2], (64, 32, 2, 2), jnp.float32)
    b2 = scale * jax.random.normal(ks[3], (64,), jnp.float32)
    w3 = scale * jax.random.normal(ks[4], (128, 64), jnp.float32)
    b3 = scale * jax.random.normal(ks[5], (128,), jnp.float32)
    w4 = scale * jax.random.normal(ks[6], (1, 128), jnp.float32)
    b4 = scale * jax.random.normal(ks[7], (1,), jnp.float32)
    return (w1, b1, w2, b2, w3, b3, w4, b4)


def reference_forward(x, params):
    """Pure-jnp f32 reference (manual convs) mirroring the PyTorch forward,
    applied per sample. x: [B,1,5,5] -> (B,)."""
    w1, b1, w2, b2, w3, b3, w4, b4 = params

    def single(xi):
        c1 = jnp.zeros((32, 2, 2), jnp.float32)
        for oh in range(2):
            for ow in range(2):
                patch = xi[0, oh:oh + 4, ow:ow + 4]
                c1 = c1.at[:, oh, ow].set(
                    jnp.sum(w1[:, 0] * patch[None], axis=(1, 2)) + b1)
        c1 = jnp.maximum(c1, 0.0)
        c2 = jnp.sum(w2 * c1[None], axis=(1, 2, 3)) + b2
        h = jnp.maximum(c2, 0.0)                       # flatten -> [64]
        h = jnp.maximum(h @ w3.T + b3, 0.0)            # fc1 -> [128]
        y = jax.nn.sigmoid(h @ w4.T + b4)              # fc2 -> [1]
        return y[0]

    return jax.vmap(single)(x)


if __name__ == "__main__":
    key = jax.random.PRNGKey(0)
    pkey, xkey = jax.random.split(key)
    params = init_params(pkey)

    B = 2 * TILE_M   # 512 samples of [1, 5, 5]
    x = jax.random.normal(xkey, (B, 1, 5, 5), jnp.float32)  # NCHW per sample

    packed = prepare_params(params)          # one-time, hoisted off the hot path
    out = jax.block_until_ready(net_forward(x, packed))

    ref = reference_forward(x, params)
    assert out.shape == (B,)
    max_err = jnp.max(jnp.abs(out - ref))
    # bf16 weights/activations vs. f32 reference -> tolerance relaxed vs. 1e-4.
    assert jnp.allclose(out, ref, atol=2e-2, rtol=2e-2), (max_err,)

    print("KERNEL_OK")
</pallas_src>

<mosaic_0001>
module attributes {stable_mosaic.version = 11 : i64} {
  func.func @net_kernel(%arg0: i32, %arg1: memref<256x32xbf16, #tpu.memory_space<vmem>>, %arg2: memref<304x128xbf16, #tpu.memory_space<vmem>>, %arg3: memref<1x256xf32, #tpu.memory_space<vmem>>) attributes {dimension_semantics = [#tpu.dimension_semantics<parallel>], iteration_bounds = array<i64: 2>, scalar_prefetch = 0 : i64, scratch_operands = 0 : i64, tpu.core_type = #tpu.core_type<tc>, window_params = [{transform_indices = @transform_0, window_bounds = array<i64: 256, 32>}, {pipeline_mode = #tpu.pipeline_mode<synchronous>, transform_indices = @transform_1, window_bounds = array<i64: 304, 128>}, {transform_indices = @transform_2, window_bounds = array<i64: 1, 256>}]} {
    %c288 = arith.constant 288 : index
    %c0 = arith.constant 0 : index
    %0 = vector.load %arg2[%c288, %c0] : memref<304x128xbf16, #tpu.memory_space<vmem>>, vector<16x128xbf16>
    %1 = arith.extf %0 : vector<16x128xbf16> to vector<16x128xf32>
    %2 = vector.extract_strided_slice %1 {offsets = [0, 0], sizes = [1, 128], strides = [1, 1]} : vector<16x128xf32> to vector<1x128xf32>
    %3 = vector.extract_strided_slice %1 {offsets = [1, 0], sizes = [1, 128], strides = [1, 1]} : vector<16x128xf32> to vector<1x128xf32>
    %4 = vector.extract_strided_slice %1 {offsets = [2, 0], sizes = [1, 128], strides = [1, 1]} : vector<16x128xf32> to vector<1x128xf32>
    %5 = vector.extract_strided_slice %1 {offsets = [3, 0], sizes = [1, 128], strides = [1, 1]} : vector<16x128xf32> to vector<1x128xf32>
    %6 = vector.extract_strided_slice %1 {offsets = [4, 0], sizes = [1, 1], strides = [1, 1]} : vector<16x128xf32> to vector<1x1xf32>
    %c0_0 = arith.constant 0 : index
    %c0_1 = arith.constant 0 : index
    %7 = vector.load %arg1[%c0_0, %c0_1] : memref<256x32xbf16, #tpu.memory_space<vmem>>, vector<256x32xbf16>
    %c0_2 = arith.constant 0 : index
    %c0_3 = arith.constant 0 : index
    %8 = vector.load %arg2[%c0_2, %c0_3] : memref<304x128xbf16, #tpu.memory_space<vmem>>, vector<32x128xbf16>
    %cst = arith.constant dense<0.000000e+00> : vector<256x128xf32>
    %9 = tpu.matmul %7, %8, %cst {dimension_numbers = #tpu.dot_dimension_numbers<[1], [0], [0], [1], [0, 0, 1, 1], [], []>} : vector<256x32xbf16>, vector<32x128xbf16>, vector<256x128xf32> -> vector<256x128xf32>
    %10 = vector.broadcast %2 : vector<1x128xf32> to vector<256x128xf32>
    %11 = arith.addf %9, %10 : vector<256x128xf32>
    %cst_4 = arith.constant 0.000000e+00 : f32
    %12 = vector.broadcast %cst_4 : f32 to vector<256x128xf32>
    %13 = arith.maximumf %11, %12 : vector<256x128xf32>
    %14 = arith.truncf %13 : vector<256x128xf32> to vector<256x128xbf16>
    %c32 = arith.constant 32 : index
    %c0_5 = arith.constant 0 : index
    %15 = vector.load %arg2[%c32, %c0_5] : memref<304x128xbf16, #tpu.memory_space<vmem>>, vector<128x128xbf16>
    %cst_6 = arith.constant dense<0.000000e+00> : vector<256x128xf32>
    %16 = tpu.matmul %14, %15, %cst_6 {dimension_numbers = #tpu.dot_dimension_numbers<[1], [0], [0], [1], [0, 0, 1, 1], [], []>} : vector<256x128xbf16>, vector<128x128xbf16>, vector<256x128xf32> -> vector<256x128xf32>
    %17 = vector.broadcast %3 : vector<1x128xf32> to vector<256x128xf32>
    %18 = arith.addf %16, %17 : vector<256x128xf32>
    %cst_7 = arith.constant 0.000000e+00 : f32
    %19 = vector.broadcast %cst_7 : f32 to vector<256x128xf32>
    %20 = arith.maximumf %18, %19 : vector<256x128xf32>
    %21 = arith.truncf %20 : vector<256x128xf32> to vector<256x128xbf16>
    %c160 = arith.constant 160 : index
    %c0_8 = arith.constant 0 : index
    %22 = vector.load %arg2[%c160, %c0_8] : memref<304x128xbf16, #tpu.memory_space<vmem>>, vector<128x128xbf16>
    %cst_9 = arith.constant dense<0.000000e+00> : vector<256x128xf32>
    %23 = tpu.matmul %21, %22, %cst_9 {dimension_numbers = #tpu.dot_dimension_numbers<[1], [0], [0], [1], [0, 0, 1, 1], [], []>} : vector<256x128xbf16>, vector<128x128xbf16>, vector<256x128xf32> -> vector<256x128xf32>
    %24 = vector.broadcast %4 : vector<1x128xf32> to vector<256x128xf32>
    %25 = arith.addf %23, %24 : vector<256x128xf32>
    %cst_10 = arith.constant 0.000000e+00 : f32
    %26 = vector.broadcast %cst_10 : f32 to vector<256x128xf32>
    %27 = arith.maximumf %25, %26 : vector<256x128xf32>
    %28 = vector.broadcast %5 : vector<1x128xf32> to vector<256x128xf32>
    %29 = arith.mulf %27, %28 : vector<256x128xf32>
    %30 = tpu.transpose %29, [1, 0] : vector<256x128xf32> -> vector<128x256xf32>
    %cst_11 = arith.constant dense<0.000000e+00> : vector<256xf32>
    %31 = vector.multi_reduction <add>, %30, %cst_11 [0] : vector<128x256xf32> to vector<256xf32>
    %32 = vector.shape_cast %31 : vector<256xf32> to vector<1x256xf32>
    %33 = vector.broadcast %6 : vector<1x1xf32> to vector<1x256xf32>
    %34 = arith.addf %32, %33 : vector<1x256xf32>
    %35 = arith.negf %34 : vector<1x256xf32>
    %36 = math.exp %35 : vector<1x256xf32>
    %cst_12 = arith.constant 1.000000e+00 : f32
    %37 = vector.broadcast %cst_12 : f32 to vector<1x256xf32>
    %38 = arith.addf %37, %36 : vector<1x256xf32>
    %39 = arith.divf %37, %38 : vector<1x256xf32>
    %c0_13 = arith.constant 0 : index
    %c0_14 = arith.constant 0 : index
    %40 = vector.load %arg3[%c0_13, %c0_14] : memref<1x256xf32, #tpu.memory_space<vmem>>, vector<1x256xf32>
    tpu.vector_store %arg3[%c0_13, %c0_14], %39 {strides = array<i32>} : memref<1x256xf32, #tpu.memory_space<vmem>>, vector<1x256xf32>,
    return
  }
  func.func @transform_0(%arg0: i32) -> (i32, i32) {
    %c0_i32 = arith.constant 0 : i32
    %c0_i32_0 = arith.constant 0 : i32
    return %arg0, %c0_i32 : i32, i32
  }
  func.func @transform_1(%arg0: i32) -> (i32, i32) {
    %c0_i32 = arith.constant 0 : i32
    %c0_i32_0 = arith.constant 0 : i32
    %c0_i32_1 = arith.constant 0 : i32
    return %c0_i32, %c0_i32_0 : i32, i32
  }
  func.func @transform_2(%arg0: i32) -> (i32, i32) {
    %c0_i32 = arith.constant 0 : i32
    %c0_i32_0 = arith.constant 0 : i32
    return %c0_i32, %arg0 : i32, i32
  }
}

</mosaic_0001>

<llo_original>
// kernel: net_forward.1
$region0: #{net_forward.1}
  #allocation0 [shape = 'u32[]', space=smem, size = 0x4, offset = 0x4, fixed_abs, tag = 'smem constant byte address 0x4 - core index']
  #allocation1 [shape = 'u32[144,128]{1,0:T(1,128)}', space=vmem, size = 0x12000, scoped, tag = 'internal scratch']
  %s0 = inlined_call_operand.vmem [shape: bf16[512,32], index: 0, kind: input, shape index: {}]
  %s1 = inlined_call_operand.vmem [shape: bf16[304,128], index: 1, kind: input, shape index: {}]
  %s2 = inlined_call_operand.hbm [shape: f32[1,512], index: 2, kind: output, shape index: {}]
  %s3 = sld [smem:[#allocation0]]
  $region41: #{net_forward.1} parent=0
    _
  %s5 = ssub.s32 1, %s3
  %s6 = scalar_select 0, %s5, %s3
  $region1: #{net_forward.1} parent=0
    #allocation2 [shape = 'u8[2048]{0}', space=vmem, size = 0x800, scoped, tag = 'output window, operand 0']
    #allocation3 [shape = 's32[2]{0}', space=sflag, size = 0x8, scoped, tag = 'scoped memory for net_forward.1']
    %7 = vsyncpa [#allocation3], 0
    %s8 = scalar_lea.sflag [#allocation3], 1
    %9 = vsyncpa %s8, 0
    loop: start=0, step=1, limit=4
    $region2: #{net_forward.1} parent=1 // loop_pre_header
      _
    $region3: #{net_forward.1} parent=1 // loop_header
      %s11 = sphi 0, %s15
      %p12 = scmp.ge.s32.totalorder %s11, 4
      %s21 = sphi 0, %s23
      %s24 = sphi 0, %s21
      %s25 = sphi 0, %s24
      %s41 = sphi 0, %s25
      %s45 = sphi 0, %s45
      %s47 = sphi 0, %s45
      %s48 = sphi 0, %s47
      %s62 = sphi 0, %s48
      %s68 = sphi 0, %s70
      %s71 = sphi 0, %s68
      %s72 = sphi 0, %s71
      %s88 = sphi 0, %s72
    $region4: #{net_forward.1} parent=1 // loop_header_branch
      %14 = sbr.rel (%p12) target = $region8
    $region5: #{net_forward.1} parent=1 // loop_body
      %s16 = ssub.s32 %s11, 1
      %s17 = ssub.s32 %s11, 2
      %s18 = sadd.s32 %s11, 1
      %s19 = ssub.s32 %s11, %s18
      %p20 = scmp.eq.s32.totalorder %s19, 0
      %s22 = sadd.s32 %s21, 1
      %s23 = scalar_select %p20, %s21, %s22
      %p26 = pneg %p20
      %p27 = scmp.eq.s32.totalorder %s11, 1
      %p28 = por %p26, %p27
      %p29 = scmp.ne.s32.totalorder %s21, %s24
      %p30 = scmp.eq.s32.totalorder %s11, 0
      %p31 = por %p29, %p30
      %p32 = scmp.ne.s32.totalorder %s21, %s24
      %p33 = scmp.eq.s32.totalorder %s16, 1
      %p34 = por %p32, %p33
      %p35 = scmp.ne.s32.totalorder %s24, %s25
      %p36 = scmp.eq.s32.totalorder %s16, 0
      %p37 = por %p35, %p36
      %p38 = scmp.ne.s32.totalorder %s24, %s25
      %p39 = scmp.eq.s32.totalorder %s17, 1
      %p40 = por %p38, %p39
      %p42 = scmp.ne.s32.totalorder %s25, %s41
      %p43 = scmp.eq.s32.totalorder %s17, 0
      %p44 = por %p42, %p43
      %s46 = sadd.s32 %s45, 1
      %p49 = scmp.eq.s32.totalorder %s11, 1
      %p50 = scmp.ne.s32.totalorder %s45, %s47
      %p51 = scmp.eq.s32.totalorder %s11, 0
      %p52 = por %p50, %p51
      %p53 = scmp.ne.s32.totalorder %s45, %s47
      %p54 = scmp.eq.s32.totalorder %s16, 1
      %p55 = por %p53, %p54
      %p56 = scmp.ne.s32.totalorder %s47, %s48
      %p57 = scmp.eq.s32.totalorder %s16, 0
      %p58 = por %p56, %p57
      %p59 = scmp.ne.s32.totalorder %s47, %s48
      %p60 = scmp.eq.s32.totalorder %s17, 1
      %p61 = por %p59, %p60
      %p63 = scmp.ne.s32.totalorder %s48, %s62
      %p64 = scmp.eq.s32.totalorder %s17, 0
      %p65 = por %p63, %p64
      %s66 = ssub.s32 %s11, %s18
      %p67 = scmp.eq.s32.totalorder %s66, 0
      %s69 = sadd.s32 %s68, 1
      %s70 = scalar_select %p67, %s68, %s69
      %p73 = pneg %p67
      %p74 = scmp.eq.s32.totalorder %s11, 1
      %p75 = por %p73, %p74
      %p76 = scmp.ne.s32.totalorder %s68, %s71
      %p77 = scmp.eq.s32.totalorder %s11, 0
      %p78 = por %p76, %p77
      %p79 = scmp.ne.s32.totalorder %s68, %s71
      %p80 = scmp.eq.s32.totalorder %s16, 1
      %p81 = por %p79, %p80
      %p82 = scmp.ne.s32.totalorder %s71, %s72
      %p83 = scmp.eq.s32.totalorder %s16, 0
      %p84 = por %p82, %p83
      %p85 = scmp.ne.s32.totalorder %s71, %s72
      %p86 = scmp.eq.s32.totalorder %s17, 1
      %p87 = por %p85, %p86
      %p89 = scmp.ne.s32.totalorder %s72, %s88
      %p90 = scmp.eq.s32.totalorder %s17, 0
      %p91 = por %p89, %p90
      %p92 = scmp.le.s32.totalorder 1, %s11
      %p93 = scmp.lt.s32.totalorder %s11, 3
      %p94 = pnand %p92, %p93
      %p95 = pneg %p94
      // Predicated region
      $region9: #{net_forward.1} parent=5 // pred_check
        _
      $region10: #{net_forward.1} parent=5 // pred_check_branch
        %97 = sbr.rel (%p94) target = $region12
      $region11: #{net_forward.1} parent=5 // pred_region
        %s98 = ssub.s32 %s11, 1
        // Predicated region
        $region13: #{net_forward.1} parent=11 // pred_check
          %p99 = pneg %p58
        $region14: #{net_forward.1} parent=11 // pred_check_branch
          %101 = sbr.rel (%p99) target = $region16
        $region15: #{net_forward.1} parent=11 // pred_region
          _
        $region16: #{net_forward.1} parent=11 // pred_fallthru
          _
      $region12: #{net_forward.1} parent=5 // pred_fallthru
        _
      %p102 = scmp.lt.s32.totalorder %s11, 2
      // Predicated region
      $region17: #{net_forward.1} parent=5 // pred_check
        %p103 = pneg %p102
      $region18: #{net_forward.1} parent=5 // pred_check_branch
        %105 = sbr.rel (%p103) target = $region20
      $region19: #{net_forward.1} parent=5 // pred_region
        // Predicated region
        $region21: #{net_forward.1} parent=19 // pred_check
          %p106 = pneg %p31
        $region22: #{net_forward.1} parent=19 // pred_check_branch
          %108 = sbr.rel (%p106) target = $region24
        $region23: #{net_forward.1} parent=19 // pred_region
          %s109 = smul.u32 32, %s11
          %p110 = scmp.lt.s32.totalorder %s109, 63
          %s111 = scalar_select %p110, %s109, 63
          %s112 = smul.addr %s111, 4
          %s113 = scalar_lea.vmem %s0, %s112
          %s114 = smul.u32 32, %s11
        $region24: #{net_forward.1} parent=19 // pred_fallthru
          _
      $region20: #{net_forward.1} parent=5 // pred_fallthru
        _
      %p115 = scmp.le.s32.totalorder 1, %s11
      %p116 = scmp.lt.s32.totalorder %s11, 3
      %p117 = pnand %p115, %p116
      %p118 = pneg %p117
      // Predicated region
      $region25: #{net_forward.1} parent=5 // pred_check
        _
      $region26: #{net_forward.1} parent=5 // pred_check_branch
        %120 = sbr.rel (%p117) target = $region28
      $region27: #{net_forward.1} parent=5 // pred_region
        %s121 = ssub.s32 %s11, 1
        %s122 = smul.u32 32, %s16
        %p123 = scmp.lt.s32.totalorder %s122, 63
        %s124 = scalar_select %p123, %s122, 63
        %s125 = smul.addr %s124, 4
        %s126 = scalar_lea.vmem %s0, %s125
        %p127 = pneg %p37
        %p128 = pneg %p34
        %p129 = pneg %p58
        %p130 = pneg %p55
        %p131 = pneg %p84
        %p132 = pneg %p81
        %s133 = sand.u32 %s71, 1
        %s134 = scalar_lea.sflag [#allocation3], %s133
        %s135 = sand.u32 %s71, 1
        %s136 = smul.addr %s135, 2
        %s137 = scalar_lea.vmem [#allocation2], %s136
        %s138 = smul.u32 32, %s16
        %p139 = scmp.lt.s32.totalorder %s138, 63
        %s140 = scalar_select %p139, %s138, 63
        %s141 = smul.addr %s140, 4
        %s142 = scalar_lea.vmem %s0, %s141
        %s143 = smul.u32 32, %s16
        %s144 = smul.u32 2, %s16
        %v146 = vld [vmem:[%s1 + $0x90] sm:$0xf]
        %v147 = vunpack.c.l.bf16 %v146
        %v148 = vld [vmem:[%s142] sm:$0xf]
        %v149 = vld [vmem:[%s142 + $0x4] sm:$0xf]
        %v150 = vld [vmem:[%s142 + $0x8] sm:$0xf]
        %v151 = vld [vmem:[%s142 + $0xc] sm:$0xf]
        %v152 = vld [vmem:[%s142 + $0x10] sm:$0xf]
        %v153 = vld [vmem:[%s142 + $0x14] sm:$0xf]
        %v154 = vld [vmem:[%s142 + $0x18] sm:$0xf]
        %v155 = vld [vmem:[%s142 + $0x1c] sm:$0xf]
        %v156 = vld [vmem:[%s142 + $0x20] sm:$0xf]
        %v157 = vld [vmem:[%s142 + $0x24] sm:$0xf]
        %v158 = vld [vmem:[%s142 + $0x28] sm:$0xf]
        %v159 = vld [vmem:[%s142 + $0x2c] sm:$0xf]
        %v160 = vld [vmem:[%s142 + $0x30] sm:$0xf]
        %v161 = vld [vmem:[%s142 + $0x34] sm:$0xf]
        %v162 = vld [vmem:[%s142 + $0x38] sm:$0xf]
        %v163 = vld [vmem:[%s142 + $0x3c] sm:$0xf]
        %v164 = vld [vmem:[%s142 + $0x40] sm:$0xf]
        %v165 = vld [vmem:[%s142 + $0x44] sm:$0xf]
        %v166 = vld [vmem:[%s142 + $0x48] sm:$0xf]
        %v167 = vld [vmem:[%s142 + $0x4c] sm:$0xf]
        %v168 = vld [vmem:[%s142 + $0x50] sm:$0xf]
        %v169 = vld [vmem:[%s142 + $0x54] sm:$0xf]
        %v170 = vld [vmem:[%s142 + $0x58] sm:$0xf]
        %v171 = vld [vmem:[%s142 + $0x5c] sm:$0xf]
        %v172 = vld [vmem:[%s142 + $0x60] sm:$0xf]
        %v173 = vld [vmem:[%s142 + $0x64] sm:$0xf]
        %v174 = vld [vmem:[%s142 + $0x68] sm:$0xf]
        %v175 = vld [vmem:[%s142 + $0x6c] sm:$0xf]
        %v176 = vld [vmem:[%s142 + $0x70] sm:$0xf]
        %v177 = vld [vmem:[%s142 + $0x74] sm:$0xf]
        %v178 = vld [vmem:[%s142 + $0x78] sm:$0xf]
        %v179 = vld [vmem:[%s142 + $0x7c] sm:$0xf]
        %v180 = vld [vmem:[%s1] sm:$0xf]
        %v181 = vld [vmem:[%s1 + $0x4] sm:$0xf]
        %v182 = vld [vmem:[%s1 + $0x8] sm:$0xf]
        %v183 = vld [vmem:[%s1 + $0xc] sm:$0xf]
        %v184 = vlaneseq
        %v185 = vshrl.u32 %v184, 7
        %v186 = vsub.s32 0, %v185
        %v187 = vrot.slane %v147, %v186
        %v220 = vunpack.c.l.b16 %v148
        %v221 = vunpack.c.l.b16 %v149
        %v222 = vunpack.c.l.b16 %v150
        %v223 = vunpack.c.l.b16 %v151
        %v224 = vunpack.c.l.b16 %v152
        %v225 = vunpack.c.l.b16 %v153
        %v226 = vunpack.c.l.b16 %v154
        %v227 = vunpack.c.l.b16 %v155
        %v228 = vunpack.c.l.b16 %v156
        %v229 = vunpack.c.l.b16 %v157
        %v230 = vunpack.c.l.b16 %v158
        %v231 = vunpack.c.l.b16 %v159
        %v232 = vunpack.c.l.b16 %v160
        %v233 = vunpack.c.l.b16 %v161
        %v234 = vunpack.c.l.b16 %v162
        %v235 = vunpack.c.l.b16 %v163
        %v236 = vunpack.c.l.b16 %v164
        %v237 = vunpack.c.l.b16 %v165
        %v238 = vunpack.c.l.b16 %v166
        %v239 = vunpack.c.l.b16 %v167
        %v240 = vunpack.c.l.b16 %v168
        %v241 = vunpack.c.l.b16 %v169
        %v242 = vunpack.c.l.b16 %v170
        %v243 = vunpack.c.l.b16 %v171
        %v244 = vunpack.c.l.b16 %v172
        %v245 = vunpack.c.l.b16 %v173
        %v246 = vunpack.c.l.b16 %v174
        %v247 = vunpack.c.l.b16 %v175
        %v248 = vunpack.c.l.b16 %v176
        %v249 = vunpack.c.l.b16 %v177
        %v250 = vunpack.c.l.b16 %v178
        %v251 = vunpack.c.l.b16 %v179
        %v252 = vpack.c.b16 %v221, %v220
        %v253 = vpack.c.b16 %v223, %v222
        %v254 = vpack.c.b16 %v225, %v224
        %v255 = vpack.c.b16 %v227, %v226
        %v256 = vpack.c.b16 %v229, %v228
        %v257 = vpack.c.b16 %v231, %v230
        %v258 = vpack.c.b16 %v233, %v232
        %v259 = vpack.c.b16 %v235, %v234
        %v260 = vpack.c.b16 %v237, %v236
        %v261 = vpack.c.b16 %v239, %v238
        %v262 = vpack.c.b16 %v241, %v240
        %v263 = vpack.c.b16 %v243, %v242
        %v264 = vpack.c.b16 %v245, %v244
        %v265 = vpack.c.b16 %v247, %v246
        %v266 = vpack.c.b16 %v249, %v248
        %v267 = vpack.c.b16 %v251, %v250
        %v272 = vunpack.c.l.b16 %v180
        %v273 = vunpack.c.l.b16 %v181
        %v274 = vunpack.c.l.b16 %v182
        %v275 = vunpack.c.l.b16 %v183
        %v276 = vpack.c.b16 %v273, %v272
        %v277 = vpack.c.b16 %v275, %v274
        %vm280 = vcmask 261120
        %v282 = vsel %vm280, %v252, 0
        %v285 = vsel %vm280, %v253, 0
        %v288 = vsel %vm280, %v254, 0
        %v291 = vsel %vm280, %v255, 0
        %v294 = vsel %vm280, %v256, 0
        %v297 = vsel %vm280, %v257, 0
        %v300 = vsel %vm280, %v258, 0
        %v303 = vsel %vm280, %v259, 0
        %v306 = vsel %vm280, %v260, 0
        %v309 = vsel %vm280, %v261, 0
        %v312 = vsel %vm280, %v262, 0
        %v315 = vsel %vm280, %v263, 0
        %v318 = vsel %vm280, %v264, 0
        %v321 = vsel %vm280, %v265, 0
        %v324 = vsel %vm280, %v266, 0
        %v327 = vsel %vm280, %v267, 0
        %329 = vmatprep.subr.bf16.mxu0 0
        %330 = vmatpush1.bf16.msra.mxu0 0
        %331 = vmatprep.subr.bf16.mxu0 0
        %332 = vmatpush1.bf16.msra.mxu0 0
        %333 = vmatprep.subr.bf16.mxu0 0
        %334 = vmatpush1.bf16.msra.mxu0 0
        %335 = vmatprep.subr.bf16.mxu0 0
        %336 = vmatpush1.bf16.msra.mxu0 0
        %337 = vmatprep.subr.bf16.mxu0 0
        %338 = vmatpush1.bf16.msra.mxu0 0
        %339 = vmatprep.subr.bf16.mxu0 0
        %340 = vmatpush1.bf16.msra.mxu0 0
        %341 = vmatprep.subr.bf16.mxu0 0
        %342 = vmatpush1.bf16.msra.mxu0 %v277
        %343 = vmatprep.subr.bf16.mxu0 0
        %344 = vmatpush1.bf16.msra.mxu0 %v276
        %345 = vmatprep.subr.bf16.mxu0 0
        %346 = vmatpush2.bf16.msra.mxu0 0
        %347 = vmatprep.subr.bf16.mxu0 0
        %348 = vmatpush2.bf16.msra.mxu0 0
        %349 = vmatprep.subr.bf16.mxu0 0
        %350 = vmatpush2.bf16.msra.mxu0 0
        %351 = vmatprep.subr.bf16.mxu0 0
        %352 = vmatpush2.bf16.msra.mxu0 0
        %353 = vmatprep.subr.bf16.mxu0 0
        %354 = vmatpush2.bf16.msra.mxu0 0
        %355 = vmatprep.subr.bf16.mxu0 0
        %356 = vmatpush2.bf16.msra.mxu0 0
        %357 = vmatprep.subr.bf16.mxu0 0
        %358 = vmatpush2.bf16.msra.mxu0 0
        %359 = vmatprep.subr.bf16.mxu0 0
        %360 = vmatpush2.bf16.msra.mxu0 0
        %361 = vmatprep.mubr.bf16.mxu0 0
        %362 = vmatmul.mubr.bf16.gmra.mxu0 %v282
        %v363 = vpop.f32.mrf.mxu0
        %v364 = vadd.f32 %v187, %v363
        %v365 = vpop.f32.mrf.mxu0
        %v366 = vpop.f32.mrf.mxu0
        %v367 = vadd.f32 %v187, %v366
        %v368 = vpop.f32.mrf.mxu0
        %369 = vmatprep.mubr.bf16.mxu0 0
        %370 = vmatmul.mubr.bf16.gmra.mxu0 %v285
        %v371 = vpop.f32.mrf.mxu0
        %v372 = vadd.f32 %v187, %v371
        %v373 = vpop.f32.mrf.mxu0
        %v374 = vpop.f32.mrf.mxu0
        %v375 = vadd.f32 %v187, %v374
        %v376 = vpop.f32.mrf.mxu0
        %377 = vmatprep.mubr.bf16.mxu0 0
        %378 = vmatmul.mubr.bf16.gmra.mxu0 %v288
        %v379 = vpop.f32.mrf.mxu0
        %v380 = vadd.f32 %v187, %v379
        %v381 = vpop.f32.mrf.mxu0
        %v382 = vpop.f32.mrf.mxu0
        %v383 = vadd.f32 %v187, %v382
        %v384 = vpop.f32.mrf.mxu0
        %385 = vmatprep.mubr.bf16.mxu0 0
        %386 = vmatmul.mubr.bf16.gmra.mxu0 %v291
        %v387 = vpop.f32.mrf.mxu0
        %v388 = vadd.f32 %v187, %v387
        %v389 = vpop.f32.mrf.mxu0
        %v390 = vpop.f32.mrf.mxu0
        %v391 = vadd.f32 %v187, %v390
        %v392 = vpop.f32.mrf.mxu0
        %393 = vmatprep.mubr.bf16.mxu0 0
        %394 = vmatmul.mubr.bf16.gmra.mxu0 %v294
        %v395 = vpop.f32.mrf.mxu0
        %v396 = vadd.f32 %v187, %v395
        %v397 = vpop.f32.mrf.mxu0
        %v398 = vpop.f32.mrf.mxu0
        %v399 = vadd.f32 %v187, %v398
        %v400 = vpop.f32.mrf.mxu0
        %401 = vmatprep.mubr.bf16.mxu0 0
        %402 = vmatmul.mubr.bf16.gmra.mxu0 %v297
        %v403 = vpop.f32.mrf.mxu0
        %v404 = vadd.f32 %v187, %v403
        %v405 = vpop.f32.mrf.mxu0
        %v406 = vpop.f32.mrf.mxu0
        %v407 = vadd.f32 %v187, %v406
        %v408 = vpop.f32.mrf.mxu0
        %409 = vmatprep.mubr.bf16.mxu0 0
        %410 = vmatmul.mubr.bf16.gmra.mxu0 %v300
        %v411 = vpop.f32.mrf.mxu0
        %v412 = vadd.f32 %v187, %v411
        %v413 = vpop.f32.mrf.mxu0
        %v414 = vpop.f32.mrf.mxu0
        %v415 = vadd.f32 %v187, %v414
        %v416 = vpop.f32.mrf.mxu0
        %417 = vmatprep.mubr.bf16.mxu0 0
        %418 = vmatmul.mubr.bf16.gmra.mxu0 %v303
        %v419 = vpop.f32.mrf.mxu0
        %v420 = vadd.f32 %v187, %v419
        %v421 = vpop.f32.mrf.mxu0
        %v422 = vpop.f32.mrf.mxu0
        %v423 = vadd.f32 %v187, %v422
        %v424 = vpop.f32.mrf.mxu0
        %425 = vmatprep.mubr.bf16.mxu0 0
        %426 = vmatmul.mubr.bf16.gmra.mxu0 %v306
        %v427 = vpop.f32.mrf.mxu0
        %v428 = vadd.f32 %v187, %v427
        %v429 = vpop.f32.mrf.mxu0
        %v430 = vpop.f32.mrf.mxu0
        %v431 = vadd.f32 %v187, %v430
        %v432 = vpop.f32.mrf.mxu0
        %433 = vmatprep.mubr.bf16.mxu0 0
        %434 = vmatmul.mubr.bf16.gmra.mxu0 %v309
        %v435 = vpop.f32.mrf.mxu0
        %v436 = vadd.f32 %v187, %v435
        %v437 = vpop.f32.mrf.mxu0
        %v438 = vpop.f32.mrf.mxu0
        %v439 = vadd.f32 %v187, %v438
        %v440 = vpop.f32.mrf.mxu0
        %441 = vmatprep.mubr.bf16.mxu0 0
        %442 = vmatmul.mubr.bf16.gmra.mxu0 %v312
        %v443 = vpop.f32.mrf.mxu0
        %v444 = vadd.f32 %v187, %v443
        %v445 = vpop.f32.mrf.mxu0
        %v446 = vpop.f32.mrf.mxu0
        %v447 = vadd.f32 %v187, %v446
        %v448 = vpop.f32.mrf.mxu0
        %449 = vmatprep.mubr.bf16.mxu0 0
        %450 = vmatmul.mubr.bf16.gmra.mxu0 %v315
        %v451 = vpop.f32.mrf.mxu0
        %v452 = vadd.f32 %v187, %v451
        %v453 = vpop.f32.mrf.mxu0
        %v454 = vpop.f32.mrf.mxu0
        %v455 = vadd.f32 %v187, %v454
        %v456 = vpop.f32.mrf.mxu0
        %457 = vmatprep.mubr.bf16.mxu0 0
        %458 = vmatmul.mubr.bf16.gmra.mxu0 %v318
        %v459 = vpop.f32.mrf.mxu0
        %v460 = vadd.f32 %v187, %v459
        %v461 = vpop.f32.mrf.mxu0
        %v462 = vpop.f32.mrf.mxu0
        %v463 = vadd.f32 %v187, %v462
        %v464 = vpop.f32.mrf.mxu0
        %465 = vmatprep.mubr.bf16.mxu0 0
        %466 = vmatmul.mubr.bf16.gmra.mxu0 %v321
        %v467 = vpop.f32.mrf.mxu0
        %v468 = vadd.f32 %v187, %v467
        %v469 = vpop.f32.mrf.mxu0
        %v470 = vpop.f32.mrf.mxu0
        %v471 = vadd.f32 %v187, %v470
        %v472 = vpop.f32.mrf.mxu0
        %473 = vmatprep.mubr.bf16.mxu0 0
        %474 = vmatmul.mubr.bf16.gmra.mxu0 %v324
        %v475 = vpop.f32.mrf.mxu0
        %v476 = vadd.f32 %v187, %v475
        %v477 = vpop.f32.mrf.mxu0
        %v478 = vpop.f32.mrf.mxu0
        %v479 = vadd.f32 %v187, %v478
        %v480 = vpop.f32.mrf.mxu0
        %481 = vmatprep.mubr.bf16.mxu0 0
        %482 = vmatmul.mubr.bf16.gmra.mxu0 %v327
        %v483 = vpop.f32.mrf.mxu0
        %v484 = vadd.f32 %v187, %v483
        %v485 = vpop.f32.mrf.mxu0
        %v486 = vpop.f32.mrf.mxu0
        %v487 = vadd.f32 %v187, %v486
        %v488 = vpop.f32.mrf.mxu0
        %489 = vdwg.mxu0
        %v490 = vmax.f32 %v364, 0.0
        %v491 = vmax.f32 %v367, 0.0
        %v492 = vmax.f32 %v372, 0.0
        %v493 = vmax.f32 %v375, 0.0
        %v494 = vmax.f32 %v380, 0.0
        %v495 = vmax.f32 %v383, 0.0
        %v496 = vmax.f32 %v388, 0.0
        %v497 = vmax.f32 %v391, 0.0
        %v498 = vmax.f32 %v396, 0.0
        %v499 = vmax.f32 %v399, 0.0
        %v500 = vmax.f32 %v404, 0.0
        %v501 = vmax.f32 %v407, 0.0
        %v502 = vmax.f32 %v412, 0.0
        %v503 = vmax.f32 %v415, 0.0
        %v504 = vmax.f32 %v420, 0.0
        %v505 = vmax.f32 %v423, 0.0
        %v506 = vmax.f32 %v428, 0.0
        %v507 = vmax.f32 %v431, 0.0
        %v508 = vmax.f32 %v436, 0.0
        %v509 = vmax.f32 %v439, 0.0
        %v510 = vmax.f32 %v444, 0.0
        %v511 = vmax.f32 %v447, 0.0
        %v512 = vmax.f32 %v452, 0.0
        %v513 = vmax.f32 %v455, 0.0
        %v514 = vmax.f32 %v460, 0.0
        %v515 = vmax.f32 %v463, 0.0
        %v516 = vmax.f32 %v468, 0.0
        %v517 = vmax.f32 %v471, 0.0
        %v518 = vmax.f32 %v476, 0.0
        %v519 = vmax.f32 %v479, 0.0
        %v520 = vmax.f32 %v484, 0.0
        %v521 = vmax.f32 %v487, 0.0
        %v522 = vpack.c.bf16 %v491, %v490
        %v523 = vpack.c.bf16 %v493, %v492
        %v524 = vpack.c.bf16 %v495, %v494
        %v525 = vpack.c.bf16 %v497, %v496
        %v526 = vpack.c.bf16 %v499, %v498
        %v527 = vpack.c.bf16 %v501, %v500
        %v528 = vpack.c.bf16 %v503, %v502
        %v529 = vpack.c.bf16 %v505, %v504
        %v530 = vpack.c.bf16 %v507, %v506
        %v531 = vpack.c.bf16 %v509, %v508
        %v532 = vpack.c.bf16 %v511, %v510
        %v533 = vpack.c.bf16 %v513, %v512
        %v534 = vpack.c.bf16 %v515, %v514
        %v535 = vpack.c.bf16 %v517, %v516
        %v536 = vpack.c.bf16 %v519, %v518
        %v537 = vpack.c.bf16 %v521, %v520
        %v538 = vld [vmem:[%s1 + $0x10] sm:$0xf]
        %v539 = vld [vmem:[%s1 + $0x14] sm:$0xf]
        %v540 = vld [vmem:[%s1 + $0x18] sm:$0xf]
        %v541 = vld [vmem:[%s1 + $0x1c] sm:$0xf]
        %v542 = vld [vmem:[%s1 + $0x20] sm:$0xf]
        %v543 = vld [vmem:[%s1 + $0x24] sm:$0xf]
        %v544 = vld [vmem:[%s1 + $0x28] sm:$0xf]
        %v545 = vld [vmem:[%s1 + $0x2c] sm:$0xf]
        %v546 = vld [vmem:[%s1 + $0x30] sm:$0xf]
        %v547 = vld [vmem:[%s1 + $0x34] sm:$0xf]
        %v548 = vld [vmem:[%s1 + $0x38] sm:$0xf]
        %v549 = vld [vmem:[%s1 + $0x3c] sm:$0xf]
        %v550 = vld [vmem:[%s1 + $0x40] sm:$0xf]
        %v551 = vld [vmem:[%s1 + $0x44] sm:$0xf]
        %v552 = vld [vmem:[%s1 + $0x48] sm:$0xf]
        %v553 = vld [vmem:[%s1 + $0x4c] sm:$0xf]
        %v554 = vlaneseq
        %v555 = vshrl.u32 %v554, 7
        %v556 = vsub.s32 1, %v555
        %v557 = vrot.slane %v147, %v556
        %v574 = vunpack.c.l.b16 %v538
        %v575 = vunpack.c.l.b16 %v539
        %v576 = vunpack.c.l.b16 %v540
        %v577 = vunpack.c.l.b16 %v541
        %v578 = vunpack.c.l.b16 %v542
        %v579 = vunpack.c.l.b16 %v543
        %v580 = vunpack.c.l.b16 %v544
        %v581 = vunpack.c.l.b16 %v545
        %v582 = vunpack.c.l.b16 %v546
        %v583 = vunpack.c.l.b16 %v547
        %v584 = vunpack.c.l.b16 %v548
        %v585 = vunpack.c.l.b16 %v549
        %v586 = vunpack.c.l.b16 %v550
        %v587 = vunpack.c.l.b16 %v551
        %v588 = vunpack.c.l.b16 %v552
        %v589 = vunpack.c.l.b16 %v553
        %v590 = vpack.c.b16 %v575, %v574
        %v591 = vpack.c.b16 %v577, %v576
        %v592 = vpack.c.b16 %v579, %v578
        %v593 = vpack.c.b16 %v581, %v580
        %v594 = vpack.c.b16 %v583, %v582
        %v595 = vpack.c.b16 %v585, %v584
        %v596 = vpack.c.b16 %v587, %v586
        %v597 = vpack.c.b16 %v589, %v588
        %606 = vmatprep.subr.bf16.mxu0 0
        %607 = vmatpush1.bf16.msra.mxu0 %v597
        %608 = vmatprep.subr.bf16.mxu0 0
        %609 = vmatpush1.bf16.msra.mxu0 %v596
        %610 = vmatprep.subr.bf16.mxu0 0
        %611 = vmatpush1.bf16.msra.mxu0 %v595
        %612 = vmatprep.subr.bf16.mxu0 0
        %613 = vmatpush1.bf16.msra.mxu0 %v594
        %614 = vmatprep.subr.bf16.mxu0 0
        %615 = vmatpush1.bf16.msra.mxu0 %v593
        %616 = vmatprep.subr.bf16.mxu0 0
        %617 = vmatpush1.bf16.msra.mxu0 %v592
        %618 = vmatprep.subr.bf16.mxu0 0
        %619 = vmatpush1.bf16.msra.mxu0 %v591
        %620 = vmatprep.subr.bf16.mxu0 0
        %621 = vmatpush1.bf16.msra.mxu0 %v590
        %622 = vmatprep.subr.bf16.mxu0 0
        %623 = vmatpush2.bf16.msra.mxu0 0
        %624 = vmatprep.subr.bf16.mxu0 0
        %625 = vmatpush2.bf16.msra.mxu0 0
        %626 = vmatprep.subr.bf16.mxu0 0
        %627 = vmatpush2.bf16.msra.mxu0 0
        %628 = vmatprep.subr.bf16.mxu0 0
        %629 = vmatpush2.bf16.msra.mxu0 0
        %630 = vmatprep.subr.bf16.mxu0 0
        %631 = vmatpush2.bf16.msra.mxu0 0
        %632 = vmatprep.subr.bf16.mxu0 0
        %633 = vmatpush2.bf16.msra.mxu0 0
        %634 = vmatprep.subr.bf16.mxu0 0
        %635 = vmatpush2.bf16.msra.mxu0 0
        %636 = vmatprep.subr.bf16.mxu0 0
        %637 = vmatpush2.bf16.msra.mxu0 0
        %638 = vmatprep.mubr.bf16.mxu0 0
        %639 = vmatmul.mubr.bf16.gmra.mxu0 %v522
        %v640 = vpop.f32.mrf.mxu0
        %v641 = vadd.f32 %v557, %v640
        %v642 = vpop.f32.mrf.mxu0
        %v643 = vpop.f32.mrf.mxu0
        %v644 = vadd.f32 %v557, %v643
        %v645 = vpop.f32.mrf.mxu0
        %646 = vmatprep.mubr.bf16.mxu0 0
        %647 = vmatmul.mubr.bf16.gmra.mxu0 %v523
        %v648 = vpop.f32.mrf.mxu0
        %v649 = vadd.f32 %v557, %v648
        %v650 = vpop.f32.mrf.mxu0
        %v651 = vpop.f32.mrf.mxu0
        %v652 = vadd.f32 %v557, %v651
        %v653 = vpop.f32.mrf.mxu0
        %654 = vmatprep.mubr.bf16.mxu0 0
        %655 = vmatmul.mubr.bf16.gmra.mxu0 %v524
        %v656 = vpop.f32.mrf.mxu0
        %v657 = vadd.f32 %v557, %v656
        %v658 = vpop.f32.mrf.mxu0
        %v659 = vpop.f32.mrf.mxu0
        %v660 = vadd.f32 %v557, %v659
        %v661 = vpop.f32.mrf.mxu0
        %662 = vmatprep.mubr.bf16.mxu0 0
        %663 = vmatmul.mubr.bf16.gmra.mxu0 %v525
        %v664 = vpop.f32.mrf.mxu0
        %v665 = vadd.f32 %v557, %v664
        %v666 = vpop.f32.mrf.mxu0
        %v667 = vpop.f32.mrf.mxu0
        %v668 = vadd.f32 %v557, %v667
        %v669 = vpop.f32.mrf.mxu0
        %670 = vmatprep.mubr.bf16.mxu0 0
        %671 = vmatmul.mubr.bf16.gmra.mxu0 %v526
        %v672 = vpop.f32.mrf.mxu0
        %v673 = vadd.f32 %v557, %v672
        %v674 = vpop.f32.mrf.mxu0
        %v675 = vpop.f32.mrf.mxu0
        %v676 = vadd.f32 %v557, %v675
        %v677 = vpop.f32.mrf.mxu0
        %678 = vmatprep.mubr.bf16.mxu0 0
        %679 = vmatmul.mubr.bf16.gmra.mxu0 %v527
        %v680 = vpop.f32.mrf.mxu0
        %v681 = vadd.f32 %v557, %v680
        %v682 = vpop.f32.mrf.mxu0
        %v683 = vpop.f32.mrf.mxu0
        %v684 = vadd.f32 %v557, %v683
        %v685 = vpop.f32.mrf.mxu0
        %686 = vmatprep.mubr.bf16.mxu0 0
        %687 = vmatmul.mubr.bf16.gmra.mxu0 %v528
        %v688 = vpop.f32.mrf.mxu0
        %v689 = vadd.f32 %v557, %v688
        %v690 = vpop.f32.mrf.mxu0
        %v691 = vpop.f32.mrf.mxu0
        %v692 = vadd.f32 %v557, %v691
        %v693 = vpop.f32.mrf.mxu0
        %694 = vmatprep.mubr.bf16.mxu0 0
        %695 = vmatmul.mubr.bf16.gmra.mxu0 %v529
        %v696 = vpop.f32.mrf.mxu0
        %v697 = vadd.f32 %v557, %v696
        %v698 = vpop.f32.mrf.mxu0
        %v699 = vpop.f32.mrf.mxu0
        %v700 = vadd.f32 %v557, %v699
        %v701 = vpop.f32.mrf.mxu0
        %702 = vmatprep.mubr.bf16.mxu0 0
        %703 = vmatmul.mubr.bf16.gmra.mxu0 %v530
        %v704 = vpop.f32.mrf.mxu0
        %v705 = vadd.f32 %v557, %v704
        %v706 = vpop.f32.mrf.mxu0
        %v707 = vpop.f32.mrf.mxu0
        %v708 = vadd.f32 %v557, %v707
        %v709 = vpop.f32.mrf.mxu0
        %710 = vmatprep.mubr.bf16.mxu0 0
        %711 = vmatmul.mubr.bf16.gmra.mxu0 %v531
        %v712 = vpop.f32.mrf.mxu0
        %v713 = vadd.f32 %v557, %v712
        %v714 = vpop.f32.mrf.mxu0
        %v715 = vpop.f32.mrf.mxu0
        %v716 = vadd.f32 %v557, %v715
        %v717 = vpop.f32.mrf.mxu0
        %718 = vmatprep.mubr.bf16.mxu0 0
        %719 = vmatmul.mubr.bf16.gmra.mxu0 %v532
        %v720 = vpop.f32.mrf.mxu0
        %v721 = vadd.f32 %v557, %v720
        %v722 = vpop.f32.mrf.mxu0
        %v723 = vpop.f32.mrf.mxu0
        %v724 = vadd.f32 %v557, %v723
        %v725 = vpop.f32.mrf.mxu0
        %726 = vmatprep.mubr.bf16.mxu0 0
        %727 = vmatmul.mubr.bf16.gmra.mxu0 %v533
        %v728 = vpop.f32.mrf.mxu0
        %v729 = vadd.f32 %v557, %v728
        %v730 = vpop.f32.mrf.mxu0
        %v731 = vpop.f32.mrf.mxu0
        %v732 = vadd.f32 %v557, %v731
        %v733 = vpop.f32.mrf.mxu0
        %734 = vmatprep.mubr.bf16.mxu0 0
        %735 = vmatmul.mubr.bf16.gmra.mxu0 %v534
        %v736 = vpop.f32.mrf.mxu0
        %v737 = vadd.f32 %v557, %v736
        %v738 = vpop.f32.mrf.mxu0
        %v739 = vpop.f32.mrf.mxu0
        %v740 = vadd.f32 %v557, %v739
        %v741 = vpop.f32.mrf.mxu0
        %742 = vmatprep.mubr.bf16.mxu0 0
        %743 = vmatmul.mubr.bf16.gmra.mxu0 %v535
        %v744 = vpop.f32.mrf.mxu0
        %v745 = vadd.f32 %v557, %v744
        %v746 = vpop.f32.mrf.mxu0
        %v747 = vpop.f32.mrf.mxu0
        %v748 = vadd.f32 %v557, %v747
        %v749 = vpop.f32.mrf.mxu0
        %750 = vmatprep.mubr.bf16.mxu0 0
        %751 = vmatmul.mubr.bf16.gmra.mxu0 %v536
        %v752 = vpop.f32.mrf.mxu0
        %v753 = vadd.f32 %v557, %v752
        %v754 = vpop.f32.mrf.mxu0
        %v755 = vpop.f32.mrf.mxu0
        %v756 = vadd.f32 %v557, %v755
        %v757 = vpop.f32.mrf.mxu0
        %758 = vmatprep.mubr.bf16.mxu0 0
        %759 = vmatmul.mubr.bf16.gmra.mxu0 %v537
        %v760 = vpop.f32.mrf.mxu0
        %v761 = vadd.f32 %v557, %v760
        %v762 = vpop.f32.mrf.mxu0
        %v763 = vpop.f32.mrf.mxu0
        %v764 = vadd.f32 %v557, %v763
        %v765 = vpop.f32.mrf.mxu0
        %766 = vdwg.mxu0
        %v767 = vmax.f32 %v641, 0.0
        %v768 = vmax.f32 %v644, 0.0
        %v769 = vmax.f32 %v649, 0.0
        %v770 = vmax.f32 %v652, 0.0
        %v771 = vmax.f32 %v657, 0.0
        %v772 = vmax.f32 %v660, 0.0
        %v773 = vmax.f32 %v665, 0.0
        %v774 = vmax.f32 %v668, 0.0
        %v775 = vmax.f32 %v673, 0.0
        %v776 = vmax.f32 %v676, 0.0
        %v777 = vmax.f32 %v681, 0.0
        %v778 = vmax.f32 %v684, 0.0
        %v779 = vmax.f32 %v689, 0.0
        %v780 = vmax.f32 %v692, 0.0
        %v781 = vmax.f32 %v697, 0.0
        %v782 = vmax.f32 %v700, 0.0
        %v783 = vmax.f32 %v705, 0.0
        %v784 = vmax.f32 %v708, 0.0
        %v785 = vmax.f32 %v713, 0.0
        %v786 = vmax.f32 %v716, 0.0
        %v787 = vmax.f32 %v721, 0.0
        %v788 = vmax.f32 %v724, 0.0
        %v789 = vmax.f32 %v729, 0.0
        %v790 = vmax.f32 %v732, 0.0
        %v791 = vmax.f32 %v737, 0.0
        %v792 = vmax.f32 %v740, 0.0
        %v793 = vmax.f32 %v745, 0.0
        %v794 = vmax.f32 %v748, 0.0
        %v795 = vmax.f32 %v753, 0.0
        %v796 = vmax.f32 %v756, 0.0
        %v797 = vmax.f32 %v761, 0.0
        %v798 = vmax.f32 %v764, 0.0
        %v799 = vpack.c.bf16 %v768, %v767
        %v800 = vpack.c.bf16 %v770, %v769
        %v801 = vpack.c.bf16 %v772, %v771
        %v802 = vpack.c.bf16 %v774, %v773
        %v803 = vpack.c.bf16 %v776, %v775
        %v804 = vpack.c.bf16 %v778, %v777
        %v805 = vpack.c.bf16 %v780, %v779
        %v806 = vpack.c.bf16 %v782, %v781
        %v807 = vpack.c.bf16 %v784, %v783
        %v808 = vpack.c.bf16 %v786, %v785
        %v809 = vpack.c.bf16 %v788, %v787
        %v810 = vpack.c.bf16 %v790, %v789
        %v811 = vpack.c.bf16 %v792, %v791
        %v812 = vpack.c.bf16 %v794, %v793
        %v813 = vpack.c.bf16 %v796, %v795
        %v814 = vpack.c.bf16 %v798, %v797
        %v815 = vld [vmem:[%s1 + $0x50] sm:$0xf]
        %v816 = vld [vmem:[%s1 + $0x54] sm:$0xf]
        %v817 = vld [vmem:[%s1 + $0x58] sm:$0xf]
        %v818 = vld [vmem:[%s1 + $0x5c] sm:$0xf]
        %v819 = vld [vmem:[%s1 + $0x60] sm:$0xf]
        %v820 = vld [vmem:[%s1 + $0x64] sm:$0xf]
        %v821 = vld [vmem:[%s1 + $0x68] sm:$0xf]
        %v822 = vld [vmem:[%s1 + $0x6c] sm:$0xf]
        %v823 = vld [vmem:[%s1 + $0x70] sm:$0xf]
        %v824 = vld [vmem:[%s1 + $0x74] sm:$0xf]
        %v825 = vld [vmem:[%s1 + $0x78] sm:$0xf]
        %v826 = vld [vmem:[%s1 + $0x7c] sm:$0xf]
        %v827 = vld [vmem:[%s1 + $0x80] sm:$0xf]
        %v828 = vld [vmem:[%s1 + $0x84] sm:$0xf]
        %v829 = vld [vmem:[%s1 + $0x88] sm:$0xf]
        %v830 = vld [vmem:[%s1 + $0x8c] sm:$0xf]
        %v831 = vlaneseq
        %v832 = vshrl.u32 %v831, 7
        %v833 = vsub.s32 2, %v832
        %v834 = vrot.slane %v147, %v833
        %v851 = vunpack.c.l.b16 %v815
        %v852 = vunpack.c.l.b16 %v816
        %v853 = vunpack.c.l.b16 %v817
        %v854 = vunpack.c.l.b16 %v818
        %v855 = vunpack.c.l.b16 %v819
        %v856 = vunpack.c.l.b16 %v820
        %v857 = vunpack.c.l.b16 %v821
        %v858 = vunpack.c.l.b16 %v822
        %v859 = vunpack.c.l.b16 %v823
        %v860 = vunpack.c.l.b16 %v824
        %v861 = vunpack.c.l.b16 %v825
        %v862 = vunpack.c.l.b16 %v826
        %v863 = vunpack.c.l.b16 %v827
        %v864 = vunpack.c.l.b16 %v828
        %v865 = vunpack.c.l.b16 %v829
        %v866 = vunpack.c.l.b16 %v830
        %v867 = vpack.c.b16 %v852, %v851
        %v868 = vpack.c.b16 %v854, %v853
        %v869 = vpack.c.b16 %v856, %v855
        %v870 = vpack.c.b16 %v858, %v857
        %v871 = vpack.c.b16 %v860, %v859
        %v872 = vpack.c.b16 %v862, %v861
        %v873 = vpack.c.b16 %v864, %v863
        %v874 = vpack.c.b16 %v866, %v865
        %883 = vmatprep.subr.bf16.mxu0 0
        %884 = vmatpush1.bf16.msra.mxu0 %v874
        %885 = vmatprep.subr.bf16.mxu0 0
        %886 = vmatpush1.bf16.msra.mxu0 %v873
        %887 = vmatprep.subr.bf16.mxu0 0
        %888 = vmatpush1.bf16.msra.mxu0 %v872
        %889 = vmatprep.subr.bf16.mxu0 0
        %890 = vmatpush1.bf16.msra.mxu0 %v871
        %891 = vmatprep.subr.bf16.mxu0 0
        %892 = vmatpush1.bf16.msra.mxu0 %v870
        %893 = vmatprep.subr.bf16.mxu0 0
        %894 = vmatpush1.bf16.msra.mxu0 %v869
        %895 = vmatprep.subr.bf16.mxu0 0
        %896 = vmatpush1.bf16.msra.mxu0 %v868
        %897 = vmatprep.subr.bf16.mxu0 0
        %898 = vmatpush1.bf16.msra.mxu0 %v867
        %899 = vmatprep.subr.bf16.mxu0 0
        %900 = vmatpush2.bf16.msra.mxu0 0
        %901 = vmatprep.subr.bf16.mxu0 0
        %902 = vmatpush2.bf16.msra.mxu0 0
        %903 = vmatprep.subr.bf16.mxu0 0
        %904 = vmatpush2.bf16.msra.mxu0 0
        %905 = vmatprep.subr.bf16.mxu0 0
        %906 = vmatpush2.bf16.msra.mxu0 0
        %907 = vmatprep.subr.bf16.mxu0 0
        %908 = vmatpush2.bf16.msra.mxu0 0
        %909 = vmatprep.subr.bf16.mxu0 0
        %910 = vmatpush2.bf16.msra.mxu0 0
        %911 = vmatprep.subr.bf16.mxu0 0
        %912 = vmatpush2.bf16.msra.mxu0 0
        %913 = vmatprep.subr.bf16.mxu0 0
        %914 = vmatpush2.bf16.msra.mxu0 0
        %915 = vmatprep.mubr.bf16.mxu0 0
        %916 = vmatmul.mubr.bf16.gmra.mxu0 %v799
        %v917 = vpop.f32.mrf.mxu0
        %v918 = vadd.f32 %v834, %v917
        %v919 = vpop.f32.mrf.mxu0
        %v920 = vpop.f32.mrf.mxu0
        %v921 = vadd.f32 %v834, %v920
        %v922 = vpop.f32.mrf.mxu0
        %923 = vmatprep.mubr.bf16.mxu0 0
        %924 = vmatmul.mubr.bf16.gmra.mxu0 %v800
        %v925 = vpop.f32.mrf.mxu0
        %v926 = vadd.f32 %v834, %v925
        %v927 = vpop.f32.mrf.mxu0
        %v928 = vpop.f32.mrf.mxu0
        %v929 = vadd.f32 %v834, %v928
        %v930 = vpop.f32.mrf.mxu0
        %931 = vmatprep.mubr.bf16.mxu0 0
        %932 = vmatmul.mubr.bf16.gmra.mxu0 %v801
        %v933 = vpop.f32.mrf.mxu0
        %v934 = vadd.f32 %v834, %v933
        %v935 = vpop.f32.mrf.mxu0
        %v936 = vpop.f32.mrf.mxu0
        %v937 = vadd.f32 %v834, %v936
        %v938 = vpop.f32.mrf.mxu0
        %939 = vmatprep.mubr.bf16.mxu0 0
        %940 = vmatmul.mubr.bf16.gmra.mxu0 %v802
        %v941 = vpop.f32.mrf.mxu0
        %v942 = vadd.f32 %v834, %v941
        %v943 = vpop.f32.mrf.mxu0
        %v944 = vpop.f32.mrf.mxu0
        %v945 = vadd.f32 %v834, %v944
        %v946 = vpop.f32.mrf.mxu0
        %947 = vmatprep.mubr.bf16.mxu0 0
        %948 = vmatmul.mubr.bf16.gmra.mxu0 %v803
        %v949 = vpop.f32.mrf.mxu0
        %v950 = vadd.f32 %v834, %v949
        %v951 = vpop.f32.mrf.mxu0
        %v952 = vpop.f32.mrf.mxu0
        %v953 = vadd.f32 %v834, %v952
        %v954 = vpop.f32.mrf.mxu0
        %955 = vmatprep.mubr.bf16.mxu0 0
        %956 = vmatmul.mubr.bf16.gmra.mxu0 %v804
        %v957 = vpop.f32.mrf.mxu0
        %v958 = vadd.f32 %v834, %v957
        %v959 = vpop.f32.mrf.mxu0
        %v960 = vpop.f32.mrf.mxu0
        %v961 = vadd.f32 %v834, %v960
        %v962 = vpop.f32.mrf.mxu0
        %963 = vmatprep.mubr.bf16.mxu0 0
        %964 = vmatmul.mubr.bf16.gmra.mxu0 %v805
        %v965 = vpop.f32.mrf.mxu0
        %v966 = vadd.f32 %v834, %v965
        %v967 = vpop.f32.mrf.mxu0
        %v968 = vpop.f32.mrf.mxu0
        %v969 = vadd.f32 %v834, %v968
        %v970 = vpop.f32.mrf.mxu0
        %971 = vmatprep.mubr.bf16.mxu0 0
        %972 = vmatmul.mubr.bf16.gmra.mxu0 %v806
        %v973 = vpop.f32.mrf.mxu0
        %v974 = vadd.f32 %v834, %v973
        %v975 = vpop.f32.mrf.mxu0
        %v976 = vpop.f32.mrf.mxu0
        %v977 = vadd.f32 %v834, %v976
        %v978 = vpop.f32.mrf.mxu0
        %979 = vmatprep.mubr.bf16.mxu0 0
        %980 = vmatmul.mubr.bf16.gmra.mxu0 %v807
        %v981 = vpop.f32.mrf.mxu0
        %v982 = vadd.f32 %v834, %v981
        %v983 = vpop.f32.mrf.mxu0
        %v984 = vpop.f32.mrf.mxu0
        %v985 = vadd.f32 %v834, %v984
        %v986 = vpop.f32.mrf.mxu0
        %987 = vmatprep.mubr.bf16.mxu0 0
        %988 = vmatmul.mubr.bf16.gmra.mxu0 %v808
        %v989 = vpop.f32.mrf.mxu0
        %v990 = vadd.f32 %v834, %v989
        %v991 = vpop.f32.mrf.mxu0
        %v992 = vpop.f32.mrf.mxu0
        %v993 = vadd.f32 %v834, %v992
        %v994 = vpop.f32.mrf.mxu0
        %995 = vmatprep.mubr.bf16.mxu0 0
        %996 = vmatmul.mubr.bf16.gmra.mxu0 %v809
        %v997 = vpop.f32.mrf.mxu0
        %v998 = vadd.f32 %v834, %v997
        %v999 = vpop.f32.mrf.mxu0
        %v1000 = vpop.f32.mrf.mxu0
        %v1001 = vadd.f32 %v834, %v1000
        %v1002 = vpop.f32.mrf.mxu0
        %1003 = vmatprep.mubr.bf16.mxu0 0
        %1004 = vmatmul.mubr.bf16.gmra.mxu0 %v810
        %v1005 = vpop.f32.mrf.mxu0
        %v1006 = vadd.f32 %v834, %v1005
        %v1007 = vpop.f32.mrf.mxu0
        %v1008 = vpop.f32.mrf.mxu0
        %v1009 = vadd.f32 %v834, %v1008
        %v1010 = vpop.f32.mrf.mxu0
        %1011 = vmatprep.mubr.bf16.mxu0 0
        %1012 = vmatmul.mubr.bf16.gmra.mxu0 %v811
        %v1013 = vpop.f32.mrf.mxu0
        %v1014 = vadd.f32 %v834, %v1013
        %v1015 = vpop.f32.mrf.mxu0
        %v1016 = vpop.f32.mrf.mxu0
        %v1017 = vadd.f32 %v834, %v1016
        %v1018 = vpop.f32.mrf.mxu0
        %1019 = vmatprep.mubr.bf16.mxu0 0
        %1020 = vmatmul.mubr.bf16.gmra.mxu0 %v812
        %v1021 = vpop.f32.mrf.mxu0
        %v1022 = vadd.f32 %v834, %v1021
        %v1023 = vpop.f32.mrf.mxu0
        %v1024 = vpop.f32.mrf.mxu0
        %v1025 = vadd.f32 %v834, %v1024
        %v1026 = vpop.f32.mrf.mxu0
        %1027 = vmatprep.mubr.bf16.mxu0 0
        %1028 = vmatmul.mubr.bf16.gmra.mxu0 %v813
        %v1029 = vpop.f32.mrf.mxu0
        %v1030 = vadd.f32 %v834, %v1029
        %v1031 = vpop.f32.mrf.mxu0
        %v1032 = vpop.f32.mrf.mxu0
        %v1033 = vadd.f32 %v834, %v1032
        %v1034 = vpop.f32.mrf.mxu0
        %1035 = vmatprep.mubr.bf16.mxu0 0
        %1036 = vmatmul.mubr.bf16.gmra.mxu0 %v814
        %v1037 = vpop.f32.mrf.mxu0
        %v1038 = vadd.f32 %v834, %v1037
        %v1039 = vpop.f32.mrf.mxu0
        %v1040 = vpop.f32.mrf.mxu0
        %v1041 = vadd.f32 %v834, %v1040
        %v1042 = vpop.f32.mrf.mxu0
        %1043 = vdwg.mxu0
        %v1044 = vmax.f32 %v918, 0.0
        %v1045 = vmax.f32 %v921, 0.0
        %v1046 = vmax.f32 %v926, 0.0
        %v1047 = vmax.f32 %v929, 0.0
        %v1048 = vmax.f32 %v934, 0.0
        %v1049 = vmax.f32 %v937, 0.0
        %v1050 = vmax.f32 %v942, 0.0
        %v1051 = vmax.f32 %v945, 0.0
        %v1052 = vmax.f32 %v950, 0.0
        %v1053 = vmax.f32 %v953, 0.0
        %v1054 = vmax.f32 %v958, 0.0
        %v1055 = vmax.f32 %v961, 0.0
        %v1056 = vmax.f32 %v966, 0.0
        %v1057 = vmax.f32 %v969, 0.0
        %v1058 = vmax.f32 %v974, 0.0
        %v1059 = vmax.f32 %v977, 0.0
        %v1060 = vmax.f32 %v982, 0.0
        %v1061 = vmax.f32 %v985, 0.0
        %v1062 = vmax.f32 %v990, 0.0
        %v1063 = vmax.f32 %v993, 0.0
        %v1064 = vmax.f32 %v998, 0.0
        %v1065 = vmax.f32 %v1001, 0.0
        %v1066 = vmax.f32 %v1006, 0.0
        %v1067 = vmax.f32 %v1009, 0.0
        %v1068 = vmax.f32 %v1014, 0.0
        %v1069 = vmax.f32 %v1017, 0.0
        %v1070 = vmax.f32 %v1022, 0.0
        %v1071 = vmax.f32 %v1025, 0.0
        %v1072 = vmax.f32 %v1030, 0.0
        %v1073 = vmax.f32 %v1033, 0.0
        %v1074 = vmax.f32 %v1038, 0.0
        %v1075 = vmax.f32 %v1041, 0.0
        %v1076 = vlaneseq
        %v1077 = vshrl.u32 %v1076, 7
        %v1078 = vsub.s32 3, %v1077
        %v1079 = vrot.slane %v147, %v1078
        %v1080 = vmul.f32 %v1044, %v1079
        %v1081 = vmul.f32 %v1045, %v1079
        %v1082 = vmul.f32 %v1046, %v1079
        %v1083 = vmul.f32 %v1047, %v1079
        %v1084 = vmul.f32 %v1048, %v1079
        %v1085 = vmul.f32 %v1049, %v1079
        %v1086 = vmul.f32 %v1050, %v1079
        %v1087 = vmul.f32 %v1051, %v1079
        %v1088 = vmul.f32 %v1052, %v1079
        %v1089 = vmul.f32 %v1053, %v1079
        %v1090 = vmul.f32 %v1054, %v1079
        %v1091 = vmul.f32 %v1055, %v1079
        %v1092 = vmul.f32 %v1056, %v1079
        %v1093 = vmul.f32 %v1057, %v1079
        %v1094 = vmul.f32 %v1058, %v1079
        %v1095 = vmul.f32 %v1059, %v1079
        %v1096 = vmul.f32 %v1060, %v1079
        %v1097 = vmul.f32 %v1061, %v1079
        %v1098 = vmul.f32 %v1062, %v1079
        %v1099 = vmul.f32 %v1063, %v1079
        %v1100 = vmul.f32 %v1064, %v1079
        %v1101 = vmul.f32 %v1065, %v1079
        %v1102 = vmul.f32 %v1066, %v1079
        %v1103 = vmul.f32 %v1067, %v1079
        %v1104 = vmul.f32 %v1068, %v1079
        %v1105 = vmul.f32 %v1069, %v1079
        %v1106 = vmul.f32 %v1070, %v1079
        %v1107 = vmul.f32 %v1071, %v1079
        %v1108 = vmul.f32 %v1072, %v1079
        %v1109 = vmul.f32 %v1073, %v1079
        %v1110 = vmul.f32 %v1074, %v1079
        %v1111 = vmul.f32 %v1075, %v1079
        %1112 = vxpose.xlu0.b32.start [1/16] %v1080, 128
        %1113 = vxpose.xlu0.b32.cont [2/16] %v1081, 128
        %1114 = vxpose.xlu0.b32.cont [3/16] %v1082, 128
        %1115 = vxpose.xlu0.b32.cont [4/16] %v1083, 128
        %1116 = vxpose.xlu0.b32.cont [5/16] %v1084, 128
        %1117 = vxpose.xlu0.b32.cont [6/16] %v1085, 128
        %1118 = vxpose.xlu0.b32.cont [7/16] %v1086, 128
        %1119 = vxpose.xlu0.b32.cont [8/16] %v1087, 128
        %1120 = vxpose.xlu0.b32.cont [9/16] %v1088, 128
        %1121 = vxpose.xlu0.b32.cont [10/16] %v1089, 128
        %1122 = vxpose.xlu0.b32.cont [11/16] %v1090, 128
        %1123 = vxpose.xlu0.b32.cont [12/16] %v1091, 128
        %1124 = vxpose.xlu0.b32.cont [13/16] %v1092, 128
        %1125 = vxpose.xlu0.b32.cont [14/16] %v1093, 128
        %1126 = vxpose.xlu0.b32.cont [15/16] %v1094, 128
        %1127 = vxpose.xlu0.b32.end [16/16] %v1095, 128
        %v1128 = vpop.trf.xlu0
        %v1129 = vpop.trf.xlu0
        %v1130 = vpop.trf.xlu0
        %v1131 = vpop.trf.xlu0
        %v1132 = vpop.trf.xlu0
        %v1133 = vpop.trf.xlu0
        %v1134 = vpop.trf.xlu0
        %v1135 = vpop.trf.xlu0
        %v1136 = vpop.trf.xlu0
        %v1137 = vpop.trf.xlu0
        %v1138 = vpop.trf.xlu0
        %v1139 = vpop.trf.xlu0
        %v1140 = vpop.trf.xlu0
        %v1141 = vpop.trf.xlu0
        %v1142 = vpop.trf.xlu0
        %v1143 = vpop.trf.xlu0
        %1144 = vxpose.xlu0.b32.start [1/16] %v1096, 128
        %1145 = vxpose.xlu0.b32.cont [2/16] %v1097, 128
        %1146 = vxpose.xlu0.b32.cont [3/16] %v1098, 128
        %1147 = vxpose.xlu0.b32.cont [4/16] %v1099, 128
        %1148 = vxpose.xlu0.b32.cont [5/16] %v1100, 128
        %1149 = vxpose.xlu0.b32.cont [6/16] %v1101, 128
        %1150 = vxpose.xlu0.b32.cont [7/16] %v1102, 128
        %1151 = vxpose.xlu0.b32.cont [8/16] %v1103, 128
        %1152 = vxpose.xlu0.b32.cont [9/16] %v1104, 128
        %1153 = vxpose.xlu0.b32.cont [10/16] %v1105, 128
        %1154 = vxpose.xlu0.b32.cont [11/16] %v1106, 128
        %1155 = vxpose.xlu0.b32.cont [12/16] %v1107, 128
        %1156 = vxpose.xlu0.b32.cont [13/16] %v1108, 128
        %1157 = vxpose.xlu0.b32.cont [14/16] %v1109, 128
        %1158 = vxpose.xlu0.b32.cont [15/16] %v1110, 128
        %1159 = vxpose.xlu0.b32.end [16/16] %v1111, 128
        %v1160 = vpop.trf.xlu0
        %v1161 = vpop.trf.xlu0
        %v1162 = vpop.trf.xlu0
        %v1163 = vpop.trf.xlu0
        %v1164 = vpop.trf.xlu0
        %v1165 = vpop.trf.xlu0
        %v1166 = vpop.trf.xlu0
        %v1167 = vpop.trf.xlu0
        %v1168 = vpop.trf.xlu0
        %v1169 = vpop.trf.xlu0
        %v1170 = vpop.trf.xlu0
        %v1171 = vpop.trf.xlu0
        %v1172 = vpop.trf.xlu0
        %v1173 = vpop.trf.xlu0
        %v1174 = vpop.trf.xlu0
        %v1175 = vpop.trf.xlu0
        %v1176 = vadd.f32 %v1128, %v1129
        %v1177 = vadd.f32 %v1176, %v1130
        %v1178 = vadd.f32 %v1177, %v1131
        %v1179 = vadd.f32 %v1178, %v1132
        %v1180 = vadd.f32 %v1179, %v1133
        %v1181 = vadd.f32 %v1180, %v1134
        %v1182 = vadd.f32 %v1181, %v1135
        %v1183 = vadd.f32 %v1182, %v1136
        %v1184 = vadd.f32 %v1183, %v1137
        %v1185 = vadd.f32 %v1184, %v1138
        %v1186 = vadd.f32 %v1185, %v1139
        %v1187 = vadd.f32 %v1186, %v1140
        %v1188 = vadd.f32 %v1187, %v1141
        %v1189 = vadd.f32 %v1188, %v1142
        %v1190 = vadd.f32 %v1189, %v1143
        %v1191 = vrot.slane %v1190, 4
        %v1192 = vadd.f32 %v1190, %v1191
        %v1193 = vrot.slane %v1192, 2
        %v1194 = vadd.f32 %v1192, %v1193
        %v1195 = vrot.slane %v1194, 1
        %v1196 = vadd.f32 %v1194, %v1195
        %v1197 = vadd.f32 %v1160, %v1161
        %v1198 = vadd.f32 %v1197, %v1162
        %v1199 = vadd.f32 %v1198, %v1163
        %v1200 = vadd.f32 %v1199, %v1164
        %v1201 = vadd.f32 %v1200, %v1165
        %v1202 = vadd.f32 %v1201, %v1166
        %v1203 = vadd.f32 %v1202, %v1167
        %v1204 = vadd.f32 %v1203, %v1168
        %v1205 = vadd.f32 %v1204, %v1169
        %v1206 = vadd.f32 %v1205, %v1170
        %v1207 = vadd.f32 %v1206, %v1171
        %v1208 = vadd.f32 %v1207, %v1172
        %v1209 = vadd.f32 %v1208, %v1173
        %v1210 = vadd.f32 %v1209, %v1174
        %v1211 = vadd.f32 %v1210, %v1175
        %v1212 = vrot.slane %v1211, 4
        %v1213 = vadd.f32 %v1211, %v1212
        %v1214 = vrot.slane %v1213, 2
        %v1215 = vadd.f32 %v1213, %v1214
        %v1216 = vrot.slane %v1215, 1
        %v1217 = vadd.f32 %v1215, %v1216
        %1219 = vset.pattern.permute.xlu0 0
        %1220 = vperm.xlu0 %1219, %v147
        %v1221 = vpop.permute.xlu0 %1220
        %v1223 = vadd.f32 %v1196, %v1221
        %v1224 = vadd.f32 %v1217, %v1221
        %v1225 = vxor.u32 %v1223, 2147483648
        %v1226 = vxor.u32 %v1224, 2147483648
        %v1227 = vmul.f32 %v1225, 1.442695
        %v1228 = vpow.pop %v1227
        %v1229 = vmul.f32 %v1226, 1.442695
        %v1230 = vpow.pop %v1229
        %v1231 = vadd.f32 %v1228, 1.0
        %v1232 = vadd.f32 %v1230, 1.0
        %v1233 = vrcp.pop %v1231
        %v1234 = vmul.f32 1.0, %v1233
        %v1235 = vrcp.pop %v1232
        %v1236 = vmul.f32 1.0, %v1235
        %v1239 = vcombine.high %v1234, %v1236
        %v1241 = vunpack.c.l.s4 1966171168
        %v1242 = vunpack.c.0.s8 %v1241
        %v1243 = vlaneseq
        %v1244 = vshrl.u32 %v1243, 7
        %v1245 = vsub.s32 %v1242, %v1244
        %v1246 = vrot.slane %v1239, %v1245
        %v1248 = vunpack.c.l.s4 1966171168
        %v1249 = vunpack.c.0.s8 %v1248
        %v1250 = vlaneseq
        %v1251 = vshrl.u32 %v1250, 7
        %v1252 = vsub.s32 %v1249, %v1251
        %v1253 = vrot.slane %v1246, %v1252
        %v1255 = vlaneseq
        %vm1256 = vcmp.ge.s32.totalorder %v1255, 0
        %vm1257 = vcmp.lt.s32.totalorder %v1255, 256
        %vm1258 = vmand %vm1256, %vm1257
        %1259 = vst.msk [vmem:[%s137] sm:$0x3] %vm1258, %v1253
        %s1260 = sand.u32 %s71, 1
        %s1261 = scalar_lea.sflag [#allocation3], %s1260
        %s1262 = sand.u32 %s71, 1
        %s1263 = smul.addr %s1262, 2
        %s1264 = scalar_lea.vmem [#allocation2], %s1263
        // Predicated region
        $region29: #{net_forward.1} parent=27 // pred_check
          %p1265 = pneg %p81
        $region30: #{net_forward.1} parent=27 // pred_check_branch
          %1267 = sbr.rel (%p1265) target = $region32
        $region31: #{net_forward.1} parent=27 // pred_region
          %s1268 = smul.u32 2, %s16
          %s1270 = ssub.s32 32, 32
          %1271 = vsyncadd %s1261, %s1270
          %s1272 = smul.addr %s1268, 16
          %s1273 = scalar_lea.hbm %s2, %s1272
          %s1275 = sshll.u32 %s1264, 4
          %s1276 = int_to_ptr.vmem [resolvable:$true] %s1275
          %1278 = dma.vmem_to_hbm [thread:$0]  %s1276, 32, %s1273, %s1261
        $region32: #{net_forward.1} parent=27 // pred_fallthru
          _
      $region28: #{net_forward.1} parent=5 // pred_fallthru
        _
      %p1279 = scmp.le.s32.totalorder 2, %s11
      // Predicated region
      $region33: #{net_forward.1} parent=5 // pred_check
        %p1280 = pneg %p1279
      $region34: #{net_forward.1} parent=5 // pred_check_branch
        %1282 = sbr.rel (%p1280) target = $region36
      $region35: #{net_forward.1} parent=5 // pred_region
        %s1283 = ssub.s32 %s11, 2
        // Predicated region
        $region37: #{net_forward.1} parent=35 // pred_check
          %p1284 = pneg %p87
        $region38: #{net_forward.1} parent=35 // pred_check_branch
          %1286 = sbr.rel (%p1284) target = $region40
        $region39: #{net_forward.1} parent=35 // pred_region
          %s1287 = sand.u32 %s72, 1
          %s1288 = scalar_lea.sflag [#allocation3], %s1287
          %s1289 = sand.u32 %s72, 1
          %s1290 = smul.addr %s1289, 2
          %s1291 = scalar_lea.vmem [#allocation2], %s1290
          %1292 = dma.done %s1288, 32
        $region40: #{net_forward.1} parent=35 // pred_fallthru
          _
      $region36: #{net_forward.1} parent=5 // pred_fallthru
        _
    $region6: #{net_forward.1} parent=1 // loop_footer
      %s15 = sadd.s32 1, %s11
    $region7: #{net_forward.1} parent=1 // loop_footer_branch
      %10 = sbr.rel target = $region3
    $region8: #{net_forward.1} parent=1 // loop_exit
      _
    %1293 = vsyncpa [#allocation3], 1
    %s1294 = scalar_lea.sflag [#allocation3], 1
    %1295 = vsyncpa %s1294, 1

</llo_original>
